<compile_context>
chip_gen: v6e
topology: v6e:2x2x1
jax: 0.10.0
libtpu: 0.0.40
codegen_flags: <defaults>
</compile_context>

<pallas_src>
import math

import numpy as np
import jax
import jax.numpy as jnp
from jax.experimental import pallas as pl
from jax.experimental.pallas import tpu as pltpu


def _round_up(x, m):
    return ((x + m - 1) // m) * m


def _vmem_capacity_bytes():
    """Per-core VMEM capacity; conservative default when not on a TPU host."""
    try:
        cap = int(pltpu.get_tpu_info().vmem_capacity_bytes)
        if cap > 0:
            return cap
    except Exception:
        pass
    return 64 * 1024 * 1024     # v7x per-TensorCore VMEM (smallest current chip)


_VMEM_CAP = _vmem_capacity_bytes()
_VMEM_LIMIT = min(_VMEM_CAP * 3 // 4, 96 * 1024 * 1024)   # scoped-vmem request
_VMEM_BUDGET = _VMEM_LIMIT * 4 // 5                        # tile-picking budget


# ----------------------------------------------------------------------------
# Fused linear kernel:  y = x @ w + b   (tiled over rows and columns)
# ----------------------------------------------------------------------------
def _linear_kernel(x_ref, w_ref, b_ref, o_ref):
    # bf16 MXU feeds, f32 accumulation.
    acc = jnp.dot(x_ref[...].astype(jnp.bfloat16),
                  w_ref[...].astype(jnp.bfloat16),
                  preferred_element_type=jnp.float32)
    o_ref[...] = (acc + b_ref[...]).astype(o_ref.dtype)


def linear(x, w, b, *, tm_max=256, tn_max=512):
    """x: (M, Din) @ w: (Din, Dout) + b: (Dout,) -> (M, Dout) float32."""
    M, Din = x.shape
    Dout = w.shape[1]

    tm = min(tm_max, _round_up(M, 8))
    Mp = _round_up(M, tm)
    Np = _round_up(Dout, 128)          # lane-dense output tiles (unmasked vst)
    tn = min(tn_max, Np)
    while Np % tn:                     # tn is a multiple of 128 dividing Np
        tn -= 128

    if Mp != M:
        x = jnp.pad(x, ((0, Mp - M), (0, 0)))
    if Np != Dout:
        w = jnp.pad(w, ((0, 0), (0, Np - Dout)))
        b = jnp.pad(b, ((0, Np - Dout),))

    # TODO(synk): tile Din with an f32 VMEM accumulator for very wide inputs.
    out = pl.pallas_call(
        _linear_kernel,
        out_shape=jax.ShapeDtypeStruct((Mp, Np), jnp.float32),
        grid=(Mp // tm, Np // tn),
        in_specs=[
            pl.BlockSpec((tm, Din), lambda i, j: (i, 0)),
            pl.BlockSpec((Din, tn), lambda i, j: (0, j)),
            pl.BlockSpec((1, tn), lambda i, j: (0, j)),
        ],
        out_specs=pl.BlockSpec((tm, tn), lambda i, j: (i, j)),
        compiler_params=pltpu.CompilerParams(
            dimension_semantics=("parallel", "parallel"),
            vmem_limit_bytes=_VMEM_LIMIT,
        ),
    )(x, w, b.reshape(1, Np))
    return out[:M, :Dout]


# ----------------------------------------------------------------------------
# Prob-attention kernel (G (batch, head) pairs per grid step)
# ----------------------------------------------------------------------------
def _prob_attn_kernel(q_ref, k_ref, v_ref, pm_ref, o_ref):
    G, L, D = q_ref.shape
    scale = 1.0 / math.sqrt(D)

    # causal (keep-diagonal) mask, built once at (L, L) and broadcast over G
    row = jax.lax.broadcasted_iota(jnp.int32, (L, L), 0)
    col = jax.lax.broadcasted_iota(jnp.int32, (L, L), 1)
    causal = col <= row

    # energy = (Q / sqrt(d)) K^T  -- scale folded into Q, bf16 MXU feeds.
    qb = (q_ref[...] * scale).astype(jnp.bfloat16)
    kb = k_ref[...].astype(jnp.bfloat16)
    energy = jnp.einsum("gqd,gkd->gqk", qb, kb,
                        preferred_element_type=jnp.float32)
    energy = jnp.where(causal[None, :, :], energy, -jnp.inf)

    # softmax #1
    m1 = jnp.max(energy, axis=-1, keepdims=True)
    e1 = jnp.exp(energy - m1)
    w1 = e1 / jnp.sum(e1, axis=-1, keepdims=True)

    # ProbMask stage: masked_fill(pm == 0, -1e9) followed by "* pm" is
    # bit-identical to w1 * pm (the -1e9 branch is multiplied by zero).
    w2 = w1 * pm_ref[...].astype(jnp.float32)

    # softmax #2
    m2 = jnp.max(w2, axis=-1, keepdims=True)
    e2 = jnp.exp(w2 - m2)
    attn = e2 / jnp.sum(e2, axis=-1, keepdims=True)

    o_ref[...] = jnp.einsum("gqk,gkd->gqd",
                            attn.astype(jnp.bfloat16),
                            v_ref[...].astype(jnp.bfloat16),
                            preferred_element_type=jnp.float32
                            ).astype(o_ref.dtype)


def _pick_group_size(BH, L, D):
    """Largest divisor of BH whose per-grid-step working set fits the VMEM
    budget, capped so the grid keeps >= 2 steps (v7x has 2 TensorCores)."""
    per_group = (
        2 * (4 * L * D * 4 + L * L * 2)   # double-buffered q/k/v/o + pm blocks
        + 10 * L * L * 4                  # live f32 LxL temporaries
        + 4 * L * D * 4                   # bf16 copies of q/k/v + headroom
    )
    g = max(1, min(BH, _VMEM_BUDGET // max(per_group, 1)))
    if BH >= 2:
        g = min(g, BH // 2)
    g = max(g, 1)
    while BH % g:
        g -= 1
    return g


def prob_attention_core(q_h, k_h, v_h, pm_h):
    """q_h/k_h/v_h: (BH, L, D), pm_h: (BH, L, L) bf16 -> out (BH, L, D) f32."""
    BH, L, D = q_h.shape
    G = _pick_group_size(BH, L, D)
    # TODO(synk): tile the KV axis flash-style (second "arbitrary" grid axis,
    # streaming softmax for both stages) for L >= ~1-2K on v7x's 64 MiB VMEM.
    return pl.pallas_call(
        _prob_attn_kernel,
        out_shape=jax.ShapeDtypeStruct((BH, L, D), jnp.float32),
        grid=(BH // G,),
        in_specs=[
            pl.BlockSpec((G, L, D), lambda i: (i, 0, 0)),
            pl.BlockSpec((G, L, D), lambda i: (i, 0, 0)),
            pl.BlockSpec((G, L, D), lambda i: (i, 0, 0)),
            pl.BlockSpec((G, L, L), lambda i: (i, 0, 0)),
        ],
        out_specs=pl.BlockSpec((G, L, D), lambda i: (i, 0, 0)),
        compiler_params=pltpu.CompilerParams(
            dimension_semantics=("parallel",),
            vmem_limit_bytes=_VMEM_LIMIT,
        ),
    )(q_h, k_h, v_h, pm_h)


# ----------------------------------------------------------------------------
# ProbMask: bernoulli(tril(-1) * dropout), float32, shape (B, H, L, L)
# ----------------------------------------------------------------------------
def make_prob_mask(key, B, H, L, dropout):
    # TODO(synk): sample on-chip with pltpu.prng_random_bits on real TPUs; the
    # CPU interpret fallback used for testing has no lowering for prng_seed.
    if float(dropout) == 0.0:
        # torch.bernoulli(0) is deterministically 0 -> all-zero mask.
        return jnp.zeros((B, H, L, L), jnp.float32)
    tril = jnp.tril(jnp.ones((L, L), jnp.bool_), k=-1)
    bern = jax.random.bernoulli(key, p=float(dropout), shape=(B, H, L, L))
    return jnp.where(tril[None, None], bern, False).astype(jnp.float32)


# ----------------------------------------------------------------------------
# ProbAttention forward (wrapper glue in plain JAX, hot paths in Pallas)
# ----------------------------------------------------------------------------
def prob_attention_forward(params, q, k=None, v=None, *, num_heads, dropout=0.0,
                           seed=0):
    if k is None:
        k = q
    if v is None:
        v = q

    B, L, dim_in = q.shape
    dim_out = params["wq"].shape[1]
    head_dim = dim_out // num_heads

    if (k is q) and (v is q):
        # Fused QKV projection: activations read from HBM once, 3x-wide output.
        w_qkv = jnp.concatenate([params["wq"], params["wk"], params["wv"]], axis=1)
        b_qkv = jnp.concatenate([params["bq"], params["bk"], params["bv"]], axis=0)
        qkv = linear(q.reshape(B * L, dim_in), w_qkv, b_qkv)
        Q = qkv[:, :dim_out]
        K = qkv[:, dim_out:2 * dim_out]
        V = qkv[:, 2 * dim_out:3 * dim_out]
    else:
        Q = linear(q.reshape(B * L, dim_in), params["wq"], params["bq"])
        K = linear(k.reshape(B * L, dim_in), params["wk"], params["bk"])
        V = linear(v.reshape(B * L, dim_in), params["wv"], params["bv"])

    # (B*L, dim_out) -> (B*H, L, head_dim)
    # TODO(synk): fold these transposes into the attention kernel's BlockSpec
    # index_map once head_dim is a 128-lane multiple (avoids HBM round trips).
    def to_heads(x):
        return (x.reshape(B, L, num_heads, head_dim)
                 .transpose(0, 2, 1, 3)
                 .reshape(B * num_heads, L, head_dim))

    Qh, Kh, Vh = to_heads(Q), to_heads(K), to_heads(V)

    pm = make_prob_mask(jax.random.PRNGKey(seed), B, num_heads, L, dropout)
    pm_h = pm.reshape(B * num_heads, L, L).astype(jnp.bfloat16)  # halve HBM read

    out_h = prob_attention_core(Qh, Kh, Vh, pm_h)

    # (B*H, L, d) -> (B, H, L, d) -> (B*L, H*d)
    out = (out_h.reshape(B, num_heads, L, head_dim)
                .transpose(0, 2, 1, 3)
                .reshape(B * L, num_heads * head_dim))
    out = linear(out, params["wo"], params["bo"])
    return out.reshape(B, L, dim_out), pm


# ----------------------------------------------------------------------------
# Pure-JAX reference (mirrors the PyTorch forward) for verification
# ----------------------------------------------------------------------------
def reference_forward(params, q, prob_mask, *, num_heads):
    B, L, dim_in = q.shape
    dim_out = params["wq"].shape[1]
    head_dim = dim_out // num_heads

    Q = q @ params["wq"] + params["bq"]
    K = q @ params["wk"] + params["bk"]
    V = q @ params["wv"] + params["bv"]

    def to_heads(x):
        return x.reshape(B, L, num_heads, head_dim).transpose(0, 2, 1, 3)

    Qh, Kh, Vh = to_heads(Q), to_heads(K), to_heads(V)

    energy = jnp.einsum("bhld,bhmd->bhlm", Qh, Kh) / math.sqrt(head_dim)
    causal = jnp.tril(jnp.ones((L, L), jnp.float32), k=0)
    energy = jnp.where(causal == 0, -jnp.inf, energy)
    w = jax.nn.softmax(energy, axis=-1)
    w = jnp.where(prob_mask == 0, -1e9, w)
    w = jax.nn.softmax(w * prob_mask, axis=-1)
    out = jnp.einsum("bhlm,bhmd->bhld", w, Vh)
    out = out.transpose(0, 2, 1, 3).reshape(B, L, num_heads * head_dim)
    return out @ params["wo"] + params["bo"]


# ----------------------------------------------------------------------------
def init_params(key, dim_in, dim_out):
    ks = jax.random.split(key, 8)
    s_in = 1.0 / math.sqrt(dim_in)
    s_out = 1.0 / math.sqrt(dim_out)
    return {
        "wq": jax.random.uniform(ks[0], (dim_in, dim_out), jnp.float32, -s_in, s_in),
        "bq": jax.random.uniform(ks[1], (dim_out,), jnp.float32, -s_in, s_in),
        "wk": jax.random.uniform(ks[2], (dim_in, dim_out), jnp.float32, -s_in, s_in),
        "bk": jax.random.uniform(ks[3], (dim_out,), jnp.float32, -s_in, s_in),
        "wv": jax.random.uniform(ks[4], (dim_in, dim_out), jnp.float32, -s_in, s_in),
        "bv": jax.random.uniform(ks[5], (dim_out,), jnp.float32, -s_in, s_in),
        "wo": jax.random.uniform(ks[6], (dim_out, dim_out), jnp.float32, -s_out, s_out),
        "bo": jax.random.uniform(ks[7], (dim_out,), jnp.float32, -s_out, s_out),
    }


if __name__ == "__main__":
    B, L, dim_in, dim_out, num_heads = 2, 8, 16, 32, 4

    key = jax.random.PRNGKey(0)
    k_param, k_x = jax.random.split(key, 2)
    params = init_params(k_param, dim_in, dim_out)
    x = jax.random.normal(k_x, (B, L, dim_in), jnp.float32)

    upper_incl = np.triu(np.ones((L, L), dtype=bool), k=0)    # diag + above
    lower_strict = np.tril(np.ones((L, L), dtype=bool), k=-1)  # tril(-1)

    # dropout=0.0 is the module default (deterministic all-zero mask);
    # dropout=0.5 exercises the Bernoulli sampling path.
    for dropout, seed in ((0.0, 0), (0.5, 123)):
        out, prob_mask = prob_attention_forward(
            params, x, num_heads=num_heads, dropout=dropout, seed=seed)
        out = jax.block_until_ready(out)
        pm_np = np.asarray(prob_mask)

        # ProbMask semantics: binary mask, zero on/above the diagonal.
        assert np.all((pm_np == 0.0) | (pm_np == 1.0))
        assert not pm_np[..., upper_incl].any()
        if dropout == 0.0:
            assert pm_np.sum() == 0.0
        else:
            frac = pm_np[..., lower_strict].mean()
            assert 0.2 < frac < 0.8, frac   # Bernoulli(0.5) sanity

        ref = reference_forward(params, x, prob_mask, num_heads=num_heads)
        # tolerance accounts for bf16 MXU feeds inside the Pallas kernels
        np.testing.assert_allclose(np.asarray(out), np.asarray(ref),
                                   rtol=3e-2, atol=3e-2)

    print("KERNEL_OK")
</pallas_src>

<mosaic_0001>
module attributes {stable_mosaic.version = 11 : i64} {
  func.func @_linear_kernel(%arg0: i32, %arg1: i32, %arg2: memref<16x16xf32, #tpu.memory_space<vmem>>, %arg3: memref<16x128xf32, #tpu.memory_space<vmem>>, %arg4: memref<1x128xf32, #tpu.memory_space<vmem>>, %arg5: memref<16x128xf32, #tpu.memory_space<vmem>>) attributes {dimension_semantics = [#tpu.dimension_semantics<parallel>, #tpu.dimension_semantics<parallel>], iteration_bounds = array<i64: 1, 1>, scalar_prefetch = 0 : i64, scratch_operands = 0 : i64, tpu.core_type = #tpu.core_type<tc>, window_params = [{transform_indices = @transform_0, window_bounds = array<i64: 16, 16>}, {transform_indices = @transform_1, window_bounds = array<i64: 16, 128>}, {transform_indices = @transform_2, window_bounds = array<i64: 1, 128>}, {transform_indices = @transform_3, window_bounds = array<i64: 16, 128>}]} {
    %c0 = arith.constant 0 : index
    %c0_0 = arith.constant 0 : index
    %0 = vector.load %arg2[%c0, %c0_0] : memref<16x16xf32, #tpu.memory_space<vmem>>, vector<16x16xf32>
    %1 = arith.truncf %0 : vector<16x16xf32> to vector<16x16xbf16>
    %c0_1 = arith.constant 0 : index
    %c0_2 = arith.constant 0 : index
    %2 = vector.load %arg3[%c0_1, %c0_2] : memref<16x128xf32, #tpu.memory_space<vmem>>, vector<16x128xf32>
    %3 = arith.truncf %2 : vector<16x128xf32> to vector<16x128xbf16>
    %cst = arith.constant dense<0.000000e+00> : vector<16x128xf32>
    %4 = tpu.matmul %1, %3, %cst {dimension_numbers = #tpu.dot_dimension_numbers<[1], [0], [0], [1], [0, 0, 1, 1], [], []>} : vector<16x16xbf16>, vector<16x128xbf16>, vector<16x128xf32> -> vector<16x128xf32>
    %c0_3 = arith.constant 0 : index
    %c0_4 = arith.constant 0 : index
    %5 = vector.load %arg4[%c0_3, %c0_4] : memref<1x128xf32, #tpu.memory_space<vmem>>, vector<1x128xf32>
    %6 = vector.broadcast %5 : vector<1x128xf32> to vector<16x128xf32>
    %7 = arith.addf %4, %6 : vector<16x128xf32>
    %c0_5 = arith.constant 0 : index
    %c0_6 = arith.constant 0 : index
    %8 = vector.load %arg5[%c0_5, %c0_6] : memref<16x128xf32, #tpu.memory_space<vmem>>, vector<16x128xf32>
    tpu.vector_store %arg5[%c0_5, %c0_6], %7 {strides = array<i32>} : memref<16x128xf32, #tpu.memory_space<vmem>>, vector<16x128xf32>,
    return
  }
  func.func @transform_0(%arg0: i32, %arg1: i32) -> (i32, i32) {
    %c0_i32 = arith.constant 0 : i32
    %c0_i32_0 = arith.constant 0 : i32
    return %arg0, %c0_i32 : i32, i32
  }
  func.func @transform_1(%arg0: i32, %arg1: i32) -> (i32, i32) {
    %c0_i32 = arith.constant 0 : i32
    %c0_i32_0 = arith.constant 0 : i32
    return %c0_i32, %arg1 : i32, i32
  }
  func.func @transform_2(%arg0: i32, %arg1: i32) -> (i32, i32) {
    %c0_i32 = arith.constant 0 : i32
    %c0_i32_0 = arith.constant 0 : i32
    return %c0_i32, %arg1 : i32, i32
  }
  func.func @transform_3(%arg0: i32, %arg1: i32) -> (i32, i32) {
    %c0_i32 = arith.constant 0 : i32
    return %arg0, %arg1 : i32, i32
  }
}

</mosaic_0001>

<llo_original>
// kernel: tpu_custom_call.1
$region0: #{tpu_custom_call.1}
  #allocation0 [shape = 'u32[]', space=smem, size = 0x4, offset = 0x4, fixed_abs, tag = 'smem constant byte address 0x4 - core index']
  #allocation1 [shape = 'u32[144,128]{1,0:T(1,128)}', space=vmem, size = 0x12000, scoped, tag = 'internal scratch']
  %s0 = inlined_call_operand.hbm [shape: f32[16,16], index: 0, kind: input, shape index: {}]
  %s1 = inlined_call_operand.hbm [shape: f32[16,128], index: 1, kind: input, shape index: {}]
  %s2 = inlined_call_operand.vmem [shape: f32[1,128], index: 2, kind: input, shape index: {}]
  %s3 = inlined_call_operand.hbm [shape: f32[16,128], index: 3, kind: output, shape index: {}]
  %s4 = sld [smem:[#allocation0]]
  $region30: #{tpu_custom_call.1} parent=0
    _
  %s6 = ssub.s32 1, %s4
  %s7 = scalar_select 0, %s6, %s4
  $region1: #{tpu_custom_call.1} parent=0
    #allocation2 [shape = 'u8[8192]{0}', space=vmem, size = 0x2000, scoped, tag = 'input window, operand 0, single buffered']
    #allocation3 [shape = 's32[1]{0}', space=sflag, size = 0x4, scoped, tag = 'scoped memory for tpu_custom_call.1']
    #allocation4 [shape = 's32[1]{0}', space=sflag, size = 0x4, scoped, tag = 'scoped memory for tpu_custom_call.1']
    #allocation5 [shape = 'u8[8192]{0}', space=vmem, size = 0x2000, scoped, tag = 'input window, operand 1, single buffered']
    #allocation6 [shape = 's32[1]{0}', space=sflag, size = 0x4, scoped, tag = 'scoped memory for tpu_custom_call.1']
    #allocation7 [shape = 'u8[8192]{0}', space=vmem, size = 0x2000, scoped, tag = 'output window, operand 0, single buffered']
    %8 = vsyncpa [#allocation3], 0
    %9 = vsyncpa [#allocation6], 0
    %10 = vsyncpa [#allocation4], 0
    // Predicated region
    $region2: #{tpu_custom_call.1} parent=1 // pred_check
      _
    $region3: #{tpu_custom_call.1} parent=1 // pred_check_branch
      %12 = sbr.rel (0) target = $region5
    $region4: #{tpu_custom_call.1} parent=1 // pred_region
      %s14 = ssub.s32 256, 256
      %15 = vsyncadd [#allocation3], %s14
      %s16 = sshll.u32 [#allocation2], 4
      %s17 = int_to_ptr.vmem [resolvable:$true] %s16
      %22 = dma.hbm_to_vmem [thread:$0]  %s0, 256, %s17, [#allocation3], 128, 128, 8
    $region5: #{tpu_custom_call.1} parent=1 // pred_fallthru
      _
    // Predicated region
    $region6: #{tpu_custom_call.1} parent=1 // pred_check
      _
    $region7: #{tpu_custom_call.1} parent=1 // pred_check_branch
      %24 = sbr.rel (0) target = $region9
    $region8: #{tpu_custom_call.1} parent=1 // pred_region
      %s26 = ssub.s32 256, 256
      %27 = vsyncadd [#allocation6], %s26
      %s28 = sshll.u32 [#allocation5], 4
      %s29 = int_to_ptr.vmem [resolvable:$true] %s28
      %34 = dma.hbm_to_vmem [thread:$0]  %s1, 256, %s29, [#allocation6], 128, 128, 8
    $region9: #{tpu_custom_call.1} parent=1 // pred_fallthru
      _
    // Predicated region
    $region10: #{tpu_custom_call.1} parent=1 // pred_check
      _
    $region11: #{tpu_custom_call.1} parent=1 // pred_check_branch
      %36 = sbr.rel (0) target = $region13
    $region12: #{tpu_custom_call.1} parent=1 // pred_region
      _
    $region13: #{tpu_custom_call.1} parent=1 // pred_fallthru
      _
    // Predicated region
    $region14: #{tpu_custom_call.1} parent=1 // pred_check
      _
    $region15: #{tpu_custom_call.1} parent=1 // pred_check_branch
      %38 = sbr.rel (0) target = $region17
    $region16: #{tpu_custom_call.1} parent=1 // pred_region
      %39 = dma.done [#allocation3], 256
    $region17: #{tpu_custom_call.1} parent=1 // pred_fallthru
      _
    // Predicated region
    $region18: #{tpu_custom_call.1} parent=1 // pred_check
      _
    $region19: #{tpu_custom_call.1} parent=1 // pred_check_branch
      %41 = sbr.rel (0) target = $region21
    $region20: #{tpu_custom_call.1} parent=1 // pred_region
      %42 = dma.done [#allocation6], 256
    $region21: #{tpu_custom_call.1} parent=1 // pred_fallthru
      _
    %v44 = vld [vmem:[#allocation2] sm:$0xff]
    %v45 = vld [vmem:[#allocation2 + $0x8] sm:$0xff]
    %v46 = vpack.c.bf16 %v45, %v44
    %v47 = vld [vmem:[#allocation5] sm:$0xff]
    %v48 = vld [vmem:[#allocation5 + $0x8] sm:$0xff]
    %v49 = vpack.c.bf16 %v48, %v47
    %v50 = vld [vmem:[%s2] sm:$0x1]
    %v52 = vlaneseq
    %v53 = vshrl.u32 %v52, 7
    %v54 = vsub.s32 0, %v53
    %v55 = vrot.slane %v50, %v54
    %vm57 = vcmask 130048
    %v59 = vsel %vm57, %v46, 0
    %61 = vmatprep.subr.bf16.mxu0 0
    %62 = vmatpush1.bf16.msra.mxu0 0
    %63 = vmatprep.subr.bf16.mxu0 0
    %64 = vmatpush1.bf16.msra.mxu0 0
    %65 = vmatprep.subr.bf16.mxu0 0
    %66 = vmatpush1.bf16.msra.mxu0 0
    %67 = vmatprep.subr.bf16.mxu0 0
    %68 = vmatpush1.bf16.msra.mxu0 0
    %69 = vmatprep.subr.bf16.mxu0 0
    %70 = vmatpush1.bf16.msra.mxu0 0
    %71 = vmatprep.subr.bf16.mxu0 0
    %72 = vmatpush1.bf16.msra.mxu0 0
    %73 = vmatprep.subr.bf16.mxu0 0
    %74 = vmatpush1.bf16.msra.mxu0 0
    %75 = vmatprep.subr.bf16.mxu0 0
    %76 = vmatpush1.bf16.msra.mxu0 %v49
    %77 = vmatprep.subr.bf16.mxu0 0
    %78 = vmatpush2.bf16.msra.mxu0 0
    %79 = vmatprep.subr.bf16.mxu0 0
    %80 = vmatpush2.bf16.msra.mxu0 0
    %81 = vmatprep.subr.bf16.mxu0 0
    %82 = vmatpush2.bf16.msra.mxu0 0
    %83 = vmatprep.subr.bf16.mxu0 0
    %84 = vmatpush2.bf16.msra.mxu0 0
    %85 = vmatprep.subr.bf16.mxu0 0
    %86 = vmatpush2.bf16.msra.mxu0 0
    %87 = vmatprep.subr.bf16.mxu0 0
    %88 = vmatpush2.bf16.msra.mxu0 0
    %89 = vmatprep.subr.bf16.mxu0 0
    %90 = vmatpush2.bf16.msra.mxu0 0
    %91 = vmatprep.subr.bf16.mxu0 0
    %92 = vmatpush2.bf16.msra.mxu0 0
    %93 = vmatprep.mubr.bf16.mxu0 0
    %94 = vmatmul.mubr.bf16.gmra.mxu0 %v59
    %v95 = vpop.f32.mrf.mxu0
    %v96 = vadd.f32 %v55, %v95
    %v97 = vpop.f32.mrf.mxu0
    %v98 = vpop.f32.mrf.mxu0
    %v99 = vadd.f32 %v55, %v98
    %v100 = vpop.f32.mrf.mxu0
    %101 = vdwg.mxu0
    %102 = vst [vmem:[#allocation7] sm:$0xff] %v96
    %103 = vst [vmem:[#allocation7 + $0x8] sm:$0xff] %v99
    // Predicated region
    $region22: #{tpu_custom_call.1} parent=1 // pred_check
      _
    $region23: #{tpu_custom_call.1} parent=1 // pred_check_branch
      %105 = sbr.rel (0) target = $region25
    $region24: #{tpu_custom_call.1} parent=1 // pred_region
      %s107 = ssub.s32 256, 256
      %108 = vsyncadd [#allocation4], %s107
      %s109 = sshll.u32 [#allocation7], 4
      %s110 = int_to_ptr.vmem [resolvable:$true] %s109
      %115 = dma.vmem_to_hbm [thread:$0]  %s110, 256, %s3, [#allocation4], 128, 128, 8
    $region25: #{tpu_custom_call.1} parent=1 // pred_fallthru
      _
    // Predicated region
    $region26: #{tpu_custom_call.1} parent=1 // pred_check
      _
    $region27: #{tpu_custom_call.1} parent=1 // pred_check_branch
      %117 = sbr.rel (0) target = $region29
    $region28: #{tpu_custom_call.1} parent=1 // pred_region
      %118 = dma.done [#allocation4], 256
    $region29: #{tpu_custom_call.1} parent=1 // pred_fallthru
      _
    %119 = vsyncpa [#allocation3], 1
    %120 = vsyncpa [#allocation6], 1
    %121 = vsyncpa [#allocation4], 1

</llo_original>
